<compile_context>
chip_gen: v5e
topology: v5e:2x2
jax: 0.10.0
libtpu: 0.0.40
codegen_flags: <defaults>
</compile_context>

<pallas_src>
import functools
from math import gcd

import jax
import jax.numpy as jnp
from jax.experimental import pallas as pl
from jax.experimental.pallas import tpu as pltpu

_NEG_BIG = -3.0e38    # behaves like -inf for finite squared distances
_POS_BIG = 3.0e38     # behaves like +inf for finite squared distances
_PAD_NORM = 1.0e30    # padded-column "norm": huge but far from f32 overflow
_LANES = 128


def _round_up(x, m):
    return ((x + m - 1) // m) * m


def _triplet_kernel(a_ref, b_ref, tr_ref, tc_ref, hinge_ref, ind_ref,
                    ap_acc, an_acc, *, margin):
    c = pl.program_id(1)

    @pl.when(c == 0)
    def _init():
        ap_acc[...] = jnp.full_like(ap_acc, _NEG_BIG)
        an_acc[...] = jnp.full_like(an_acc, _POS_BIG)

    # Squared pairwise distances straight out of the MXU (augmented operands):
    #   dist2_ij = a_i . b_j = -2 x_i.x_j + |x_i|^2 + |x_j|^2
    dist2 = jnp.dot(a_ref[...], b_ref[...], preferred_element_type=jnp.float32)

    # Online masked max/min, deferred cross-lane reduce: only per-128-lane
    # elementwise VPU max/min here; the XLU reduce happens once in finalize.
    tr = tr_ref[...]                                  # (blk_r, 1) int32
    ap = ap_acc[...]                                  # (blk_r, 128) f32
    an = an_acc[...]                                  # (blk_r, 128) f32
    blk_c = dist2.shape[1]
    for j in range(blk_c // _LANES):
        sl = slice(j * _LANES, (j + 1) * _LANES)
        d2 = dist2[:, sl]                             # (blk_r, 128)
        m = tr == tc_ref[:, sl]                       # same-identity mask chunk
        ap = jnp.maximum(ap, jnp.where(m, d2, _NEG_BIG))
        an = jnp.minimum(an, jnp.where(m, _POS_BIG, d2))
    ap_acc[...] = ap
    an_acc[...] = an

    @pl.when(c == pl.num_programs(1) - 1)
    def _finalize():
        # Single cross-lane reduce per row block, then clamp(1e-12).sqrt()
        # only on the mined (blk_r, 1) vectors (clamp/sqrt are monotone).
        d_ap2 = jnp.max(ap_acc[...], axis=1, keepdims=True)
        d_an2 = jnp.min(an_acc[...], axis=1, keepdims=True)
        d_ap = jnp.sqrt(jnp.maximum(d_ap2, 1e-12))
        d_an = jnp.sqrt(jnp.maximum(d_an2, 1e-12))
        # MarginRankingLoss(margin)(d_an, d_ap, y=1): max(0, d_ap - d_an + m)
        hinge_ref[...] = jnp.maximum(d_ap - d_an + jnp.float32(margin), 0.0)
        ind_ref[...] = (d_an > d_ap).astype(jnp.float32)


def triplet_loss(inputs, targets, margin=0.5, block_rows=256, block_cols=1024):
    """inputs: (N, D) float; targets: (N,) int.  Returns (loss, prec) f32 scalars."""
    n, d = inputs.shape
    x = inputs.astype(jnp.float32)
    sq = jnp.sum(x * x, axis=1)                        # (N,) exact f32 norms

    # ---- Tile selection: 8/128-aligned, clamped for small N (defaults are
    #      256-aligned for the v6e/v7x 2x256x256 MXU).  N is padded up to a
    #      common multiple of both tiles, so no full-extent fallback is needed.
    blk_c = min(block_cols, _round_up(n, _LANES))
    blk_c = max(_LANES, (blk_c // _LANES) * _LANES)
    blk_r = min(block_rows, _round_up(n, 8))
    blk_r = max(8, (blk_r // 8) * 8)
    n_pad = _round_up(n, blk_r * blk_c // gcd(blk_r, blk_c))
    grid = (n_pad // blk_r, n_pad // blk_c)

    # ---- Augmented MXU operands (built once; no in-kernel transposes/norms).
    #      a_i = [-2*x_i, |x_i|^2, 1],  b_j = [x_j ; 1 ; |x_j|^2].
    #      Contraction dim padded only to a sublane multiple (no 128 padding).
    k_aug = _round_up(d + 2, 8)
    a_mat = jnp.zeros((n_pad, k_aug), jnp.float32)
    a_mat = a_mat.at[:n, :d].set(-2.0 * x)
    a_mat = a_mat.at[:n, d].set(sq)
    a_mat = a_mat.at[:n, d + 1].set(1.0)

    b_cols = jnp.zeros((n_pad, k_aug), jnp.float32)
    b_cols = b_cols.at[:n, :d].set(x)
    b_cols = b_cols.at[:n, d].set(1.0)
    b_cols = b_cols.at[:n, d + 1].set(sq)
    # Padded columns get a huge "norm" so they can never win negative mining.
    b_cols = b_cols.at[n:, d + 1].set(_PAD_NORM)
    b_mat = b_cols.T                                   # (k_aug, n_pad)

    # Sentinel labels for padded rows/cols: never equal to any real identity,
    # so padded columns are never hard-positive candidates for real rows.
    sentinel = int(jnp.iinfo(jnp.int32).min)
    t = jnp.full((n_pad,), sentinel, dtype=jnp.int32).at[:n].set(
        targets.astype(jnp.int32))
    t_r = t.reshape(n_pad, 1)
    t_c = t.reshape(1, n_pad)

    hinge, ind = pl.pallas_call(
        functools.partial(_triplet_kernel, margin=float(margin)),
        out_shape=(
            jax.ShapeDtypeStruct((n_pad, 1), jnp.float32),   # per-row hinge
            jax.ShapeDtypeStruct((n_pad, 1), jnp.float32),   # per-row (d_an > d_ap)
        ),
        grid_spec=pltpu.PrefetchScalarGridSpec(
            num_scalar_prefetch=0,
            grid=grid,
            in_specs=[
                pl.BlockSpec((blk_r, k_aug), lambda r, c: (r, 0)),   # A row block
                pl.BlockSpec((k_aug, blk_c), lambda r, c: (0, c)),   # B col block
                pl.BlockSpec((blk_r, 1), lambda r, c: (r, 0)),       # labels rows
                pl.BlockSpec((1, blk_c), lambda r, c: (0, c)),       # labels cols
            ],
            out_specs=[
                pl.BlockSpec((blk_r, 1), lambda r, c: (r, 0)),
                pl.BlockSpec((blk_r, 1), lambda r, c: (r, 0)),
            ],
            scratch_shapes=[
                pltpu.VMEM((blk_r, _LANES), jnp.float32),  # running max d^2 (pos)
                pltpu.VMEM((blk_r, _LANES), jnp.float32),  # running min d^2 (neg)
            ],
        ),
        compiler_params=pltpu.CompilerParams(
            dimension_semantics=("parallel", "arbitrary"),
            vmem_limit_bytes=48 * 1024 * 1024,   # <= ~48 MiB: safe on v7x's 64 MiB/TC
        ),
    )(a_mat, b_mat, t_r, t_c)

    # TODO(synk): emit per-row-block partial sums from the kernel to drop the
    # lane-sparse (N,1) writeback; kept per-row outputs for simplicity/safety.
    inv_n = jnp.float32(1.0 / n)
    loss = jnp.sum(hinge[:n]) * inv_n
    prec = jnp.sum(ind[:n]) * inv_n
    return loss, prec


def triplet_loss_ref(inputs, targets, margin=0.5):
    """Pure-JAX reference mirroring the PyTorch forward."""
    x = inputs.astype(jnp.float32)
    sq = jnp.sum(x ** 2, axis=1, keepdims=True)
    dist = sq + sq.T - 2.0 * x @ x.T
    dist = jnp.sqrt(jnp.maximum(dist, 1e-12))
    mask = targets[:, None] == targets[None, :]
    dist_ap = jnp.max(jnp.where(mask, dist, -jnp.inf), axis=1)
    dist_an = jnp.min(jnp.where(mask, jnp.inf, dist), axis=1)
    loss = jnp.mean(jnp.maximum(dist_ap - dist_an + margin, 0.0))
    prec = jnp.mean((dist_an > dist_ap).astype(jnp.float32))
    return loss, prec


if __name__ == "__main__":
    key = jax.random.PRNGKey(0)
    k1, k2, k3 = jax.random.split(key, 3)

    # Case 1: batch=32 (8 identities x 4 images), feature dim=32.
    # block_rows=8 forces many row blocks (parallel axis) and N-padding to 128.
    n, d = 32, 32
    inputs = jax.random.normal(k1, (n, d), dtype=jnp.float32)
    targets = jnp.repeat(jnp.arange(8, dtype=jnp.int32), 4)

    loss, prec = triplet_loss(inputs, targets, block_rows=8)
    loss = jax.block_until_ready(loss)
    prec = jax.block_until_ready(prec)
    loss_ref, prec_ref = triplet_loss_ref(inputs, targets)
    assert jnp.allclose(loss, loss_ref, atol=5e-4), (loss, loss_ref)
    assert jnp.allclose(prec, prec_ref, atol=1e-6), (prec, prec_ref)

    # Case 2: exercises both grid axes (row + column tiling, online column
    # accumulation across two column blocks).
    n2, d2 = 256, 64
    inputs2 = jax.random.normal(k2, (n2, d2), dtype=jnp.float32)
    targets2 = jnp.repeat(jnp.arange(n2 // 4, dtype=jnp.int32), 4)

    loss2, prec2 = triplet_loss(inputs2, targets2, block_rows=64, block_cols=128)
    loss2 = jax.block_until_ready(loss2)
    prec2 = jax.block_until_ready(prec2)
    loss2_ref, prec2_ref = triplet_loss_ref(inputs2, targets2)
    assert jnp.allclose(loss2, loss2_ref, atol=5e-4), (loss2, loss2_ref)
    assert jnp.allclose(prec2, prec2_ref, atol=1e-6), (prec2, prec2_ref)

    # Case 3: awkward N (not a multiple of 8/128) exercises the sentinel
    # N-padding path with default tile sizes.
    n3, d3 = 30, 48
    inputs3 = jax.random.normal(k3, (n3, d3), dtype=jnp.float32)
    targets3 = jnp.arange(n3, dtype=jnp.int32) % 10

    loss3, prec3 = triplet_loss(inputs3, targets3)
    loss3 = jax.block_until_ready(loss3)
    prec3 = jax.block_until_ready(prec3)
    loss3_ref, prec3_ref = triplet_loss_ref(inputs3, targets3)
    assert jnp.allclose(loss3, loss3_ref, atol=5e-4), (loss3, loss3_ref)
    assert jnp.allclose(prec3, prec3_ref, atol=1e-6), (prec3, prec3_ref)

    print("KERNEL_OK")
</pallas_src>

<mosaic_0001>
module attributes {stable_mosaic.version = 11 : i64} {
  func.func @_triplet_kernel(%arg0: i32, %arg1: i32, %arg2: memref<8x40xf32, #tpu.memory_space<vmem>>, %arg3: memref<40x128xf32, #tpu.memory_space<vmem>>, %arg4: memref<8x1xi32, #tpu.memory_space<vmem>>, %arg5: memref<1x128xi32, #tpu.memory_space<vmem>>, %arg6: memref<8x1xf32, #tpu.memory_space<vmem>>, %arg7: memref<8x1xf32, #tpu.memory_space<vmem>>, %arg8: memref<8x128xf32, #tpu.memory_space<vmem>>, %arg9: memref<8x128xf32, #tpu.memory_space<vmem>>) attributes {dimension_semantics = [#tpu.dimension_semantics<parallel>, #tpu.dimension_semantics<arbitrary>], iteration_bounds = array<i64: 16, 1>, scalar_prefetch = 0 : i64, scratch_operands = 2 : i64, tpu.core_type = #tpu.core_type<tc>, window_params = [{transform_indices = @transform_0, window_bounds = array<i64: 8, 40>}, {transform_indices = @transform_1, window_bounds = array<i64: 40, 128>}, {transform_indices = @transform_2, window_bounds = array<i64: 8, 1>}, {transform_indices = @transform_3, window_bounds = array<i64: 1, 128>}, {transform_indices = @transform_4, window_bounds = array<i64: 8, 1>}, {transform_indices = @transform_5, window_bounds = array<i64: 8, 1>}]} {
    %c0_i32 = arith.constant 0 : i32
    %0 = arith.cmpi eq, %arg1, %c0_i32 : i32
    %1 = arith.extui %0 : i1 to i32
    %c0_i32_0 = arith.constant 0 : i32
    %2 = arith.cmpi ne, %1, %c0_i32_0 : i32
    scf.if %2 {
      %cst_20 = arith.constant -3.000000e+38 : f32
      %24 = vector.broadcast %cst_20 : f32 to vector<8x128xf32>
      %c0_21 = arith.constant 0 : index
      %c0_22 = arith.constant 0 : index
      %25 = vector.load %arg8[%c0_21, %c0_22] : memref<8x128xf32, #tpu.memory_space<vmem>>, vector<8x128xf32>
      tpu.vector_store %arg8[%c0_21, %c0_22], %24 {strides = array<i32>} : memref<8x128xf32, #tpu.memory_space<vmem>>, vector<8x128xf32>,
      %cst_23 = arith.constant 3.000000e+38 : f32
      %26 = vector.broadcast %cst_23 : f32 to vector<8x128xf32>
      %c0_24 = arith.constant 0 : index
      %c0_25 = arith.constant 0 : index
      %27 = vector.load %arg9[%c0_24, %c0_25] : memref<8x128xf32, #tpu.memory_space<vmem>>, vector<8x128xf32>
      tpu.vector_store %arg9[%c0_24, %c0_25], %26 {strides = array<i32>} : memref<8x128xf32, #tpu.memory_space<vmem>>, vector<8x128xf32>,
    } else {
    }
    %c0 = arith.constant 0 : index
    %c0_1 = arith.constant 0 : index
    %3 = vector.load %arg2[%c0, %c0_1] : memref<8x40xf32, #tpu.memory_space<vmem>>, vector<8x40xf32>
    %c0_2 = arith.constant 0 : index
    %c0_3 = arith.constant 0 : index
    %4 = vector.load %arg3[%c0_2, %c0_3] : memref<40x128xf32, #tpu.memory_space<vmem>>, vector<40x128xf32>
    %cst = arith.constant dense<0.000000e+00> : vector<8x128xf32>
    %5 = tpu.matmul %3, %4, %cst {dimension_numbers = #tpu.dot_dimension_numbers<[1], [0], [0], [1], [0, 0, 1, 1], [], []>} : vector<8x40xf32>, vector<40x128xf32>, vector<8x128xf32> -> vector<8x128xf32>
    %c0_4 = arith.constant 0 : index
    %c0_5 = arith.constant 0 : index
    %6 = vector.load %arg4[%c0_4, %c0_5] : memref<8x1xi32, #tpu.memory_space<vmem>>, vector<8x1xi32>
    %c0_6 = arith.constant 0 : index
    %c0_7 = arith.constant 0 : index
    %7 = vector.load %arg8[%c0_6, %c0_7] : memref<8x128xf32, #tpu.memory_space<vmem>>, vector<8x128xf32>
    %c0_8 = arith.constant 0 : index
    %c0_9 = arith.constant 0 : index
    %8 = vector.load %arg9[%c0_8, %c0_9] : memref<8x128xf32, #tpu.memory_space<vmem>>, vector<8x128xf32>
    %c0_10 = arith.constant 0 : index
    %c0_11 = arith.constant 0 : index
    %9 = vector.load %arg5[%c0_10, %c0_11] : memref<1x128xi32, #tpu.memory_space<vmem>>, vector<1x128xi32>
    %10 = vector.broadcast %6 : vector<8x1xi32> to vector<8x128xi32>
    %11 = vector.broadcast %9 : vector<1x128xi32> to vector<8x128xi32>
    %12 = arith.cmpi eq, %10, %11 : vector<8x128xi32>
    %cst_12 = arith.constant -3.000000e+38 : f32
    %13 = vector.broadcast %cst_12 : f32 to vector<8x128xf32>
    %14 = arith.select %12, %5, %13 : vector<8x128xi1>, vector<8x128xf32>
    %15 = arith.maximumf %7, %14 : vector<8x128xf32>
    %cst_13 = arith.constant 3.000000e+38 : f32
    %16 = vector.broadcast %cst_13 : f32 to vector<8x128xf32>
    %17 = arith.select %12, %16, %5 : vector<8x128xi1>, vector<8x128xf32>
    %18 = arith.minimumf %8, %17 : vector<8x128xf32>
    %c0_14 = arith.constant 0 : index
    %c0_15 = arith.constant 0 : index
    %19 = vector.load %arg8[%c0_14, %c0_15] : memref<8x128xf32, #tpu.memory_space<vmem>>, vector<8x128xf32>
    tpu.vector_store %arg8[%c0_14, %c0_15], %15 {strides = array<i32>} : memref<8x128xf32, #tpu.memory_space<vmem>>, vector<8x128xf32>,
    %c0_16 = arith.constant 0 : index
    %c0_17 = arith.constant 0 : index
    %20 = vector.load %arg9[%c0_16, %c0_17] : memref<8x128xf32, #tpu.memory_space<vmem>>, vector<8x128xf32>
    tpu.vector_store %arg9[%c0_16, %c0_17], %18 {strides = array<i32>} : memref<8x128xf32, #tpu.memory_space<vmem>>, vector<8x128xf32>,
    %c0_i32_18 = arith.constant 0 : i32
    %21 = arith.cmpi eq, %arg1, %c0_i32_18 : i32
    %22 = arith.extui %21 : i1 to i32
    %c0_i32_19 = arith.constant 0 : i32
    %23 = arith.cmpi ne, %22, %c0_i32_19 : i32
    scf.if %23 {
      %c0_20 = arith.constant 0 : index
      %c0_21 = arith.constant 0 : index
      %24 = vector.load %arg8[%c0_20, %c0_21] : memref<8x128xf32, #tpu.memory_space<vmem>>, vector<8x128xf32>
      %cst_22 = arith.constant dense<0xFF800000> : vector<8xf32>
      %25 = vector.multi_reduction <maximumf>, %24, %cst_22 [1] : vector<8x128xf32> to vector<8xf32>
      %26 = vector.shape_cast %25 : vector<8xf32> to vector<8x1xf32>
      %c0_23 = arith.constant 0 : index
      %c0_24 = arith.constant 0 : index
      %27 = vector.load %arg9[%c0_23, %c0_24] : memref<8x128xf32, #tpu.memory_space<vmem>>, vector<8x128xf32>
      %cst_25 = arith.constant dense<0x7F800000> : vector<8xf32>
      %28 = vector.multi_reduction <minimumf>, %27, %cst_25 [1] : vector<8x128xf32> to vector<8xf32>
      %29 = vector.shape_cast %28 : vector<8xf32> to vector<8x1xf32>
      %cst_26 = arith.constant 9.99999996E-13 : f32
      %30 = vector.broadcast %cst_26 : f32 to vector<8x1xf32>
      %31 = arith.maximumf %26, %30 : vector<8x1xf32>
      %32 = math.sqrt %31 : vector<8x1xf32>
      %cst_27 = arith.constant 9.99999996E-13 : f32
      %33 = vector.broadcast %cst_27 : f32 to vector<8x1xf32>
      %34 = arith.maximumf %29, %33 : vector<8x1xf32>
      %35 = math.sqrt %34 : vector<8x1xf32>
      %36 = arith.subf %32, %35 : vector<8x1xf32>
      %cst_28 = arith.constant 5.000000e-01 : f32
      %37 = vector.broadcast %cst_28 : f32 to vector<8x1xf32>
      %38 = arith.addf %36, %37 : vector<8x1xf32>
      %cst_29 = arith.constant 0.000000e+00 : f32
      %39 = vector.broadcast %cst_29 : f32 to vector<8x1xf32>
      %40 = arith.maximumf %38, %39 : vector<8x1xf32>
      %c0_30 = arith.constant 0 : index
      %c0_31 = arith.constant 0 : index
      %41 = vector.load %arg6[%c0_30, %c0_31] : memref<8x1xf32, #tpu.memory_space<vmem>>, vector<8x1xf32>
      tpu.vector_store %arg6[%c0_30, %c0_31], %40 {strides = array<i32>} : memref<8x1xf32, #tpu.memory_space<vmem>>, vector<8x1xf32>,
      %42 = arith.cmpf ogt, %35, %32 : vector<8x1xf32>
      %43 = arith.extui %42 : vector<8x1xi1> to vector<8x1xi32>
      %44 = arith.sitofp %43 : vector<8x1xi32> to vector<8x1xf32>
      %c0_32 = arith.constant 0 : index
      %c0_33 = arith.constant 0 : index
      %45 = vector.load %arg7[%c0_32, %c0_33] : memref<8x1xf32, #tpu.memory_space<vmem>>, vector<8x1xf32>
      tpu.vector_store %arg7[%c0_32, %c0_33], %44 {strides = array<i32>} : memref<8x1xf32, #tpu.memory_space<vmem>>, vector<8x1xf32>,
    } else {
    }
    return
  }
  func.func @transform_0(%arg0: i32, %arg1: i32) -> (i32, i32) {
    %c0_i32 = arith.constant 0 : i32
    %c0_i32_0 = arith.constant 0 : i32
    return %arg0, %c0_i32 : i32, i32
  }
  func.func @transform_1(%arg0: i32, %arg1: i32) -> (i32, i32) {
    %c0_i32 = arith.constant 0 : i32
    %c0_i32_0 = arith.constant 0 : i32
    return %c0_i32, %arg1 : i32, i32
  }
  func.func @transform_2(%arg0: i32, %arg1: i32) -> (i32, i32) {
    %c0_i32 = arith.constant 0 : i32
    %c0_i32_0 = arith.constant 0 : i32
    return %arg0, %c0_i32 : i32, i32
  }
  func.func @transform_3(%arg0: i32, %arg1: i32) -> (i32, i32) {
    %c0_i32 = arith.constant 0 : i32
    %c0_i32_0 = arith.constant 0 : i32
    return %c0_i32, %arg1 : i32, i32
  }
  func.func @transform_4(%arg0: i32, %arg1: i32) -> (i32, i32) {
    %c0_i32 = arith.constant 0 : i32
    %c0_i32_0 = arith.constant 0 : i32
    return %arg0, %c0_i32 : i32, i32
  }
  func.func @transform_5(%arg0: i32, %arg1: i32) -> (i32, i32) {
    %c0_i32 = arith.constant 0 : i32
    %c0_i32_0 = arith.constant 0 : i32
    return %arg0, %c0_i32 : i32, i32
  }
}

</mosaic_0001>

<llo_original>
// kernel: tpu_custom_call.1
$region0: #{tpu_custom_call.1}
  #allocation0 [shape = 'u32[]', space=smem, size = 0x4, offset = 0x4, fixed_abs, tag = 'smem constant byte address 0x4 - core index']
  #allocation1 [shape = 'u32[72,128]{1,0:T(1,128)}', space=vmem, size = 0x9000, scoped, tag = 'internal scratch']
  #allocation2 [shape = 'f32[8,128]{1,0:T(8,128)}', space=vmem, size = 0x1000, scoped, tag = 'scratch operand']
  #allocation3 [shape = 'f32[8,128]{1,0:T(8,128)}', space=vmem, size = 0x1000, scoped, tag = 'scratch operand']
  %s0 = inlined_call_operand.vmem [shape: f32[128,40], index: 0, kind: input, shape index: {}]
  %s1 = inlined_call_operand.vmem [shape: f32[40,128], index: 1, kind: input, shape index: {}]
  %s2 = inlined_call_operand.vmem [shape: s32[128,1], index: 2, kind: input, shape index: {}]
  %s3 = inlined_call_operand.vmem [shape: s32[1,128], index: 3, kind: input, shape index: {}]
  %s4 = inlined_call_operand.vmem [shape: f32[128,1], index: 4, kind: output, shape index: {0}]
  %s5 = inlined_call_operand.vmem [shape: f32[128,1], index: 5, kind: output, shape index: {1}]
  %6 = xla_tuple %s4, %s5
  %s7 = sld [smem:[#allocation0]]
  $region65: #{tpu_custom_call.1} parent=0
    _
  %s9 = ssub.s32 1, %s7
  %s10 = scalar_select 0, %s9, %s7
  loop: start=0, step=1, limit=18
  $region2: #{tpu_custom_call.1} parent=0 // loop_pre_header
    _
  $region3: #{tpu_custom_call.1} parent=0 // loop_header
    %s12 = sphi 0, %s16
    %p13 = scmp.ge.s32.totalorder %s12, 18
    %s19 = sphi 0, %s31
    %s20 = sphi 0, %s27
    %s21 = sphi 0, %s19
    %s22 = sphi 0, %s20
    %s23 = sphi 0, %s21
    %s24 = sphi 0, %s22
    %s34 = sphi 0, %s36
    %s37 = sphi 0, %s34
    %s38 = sphi 0, %s37
    %s54 = sphi 0, %s38
    %s60 = sphi 0, %s62
    %s63 = sphi 0, %s60
    %s64 = sphi 0, %s63
    %s80 = sphi 0, %s64
    %s86 = sphi 0, %s88
    %s89 = sphi 0, %s86
    %s90 = sphi 0, %s89
    %s106 = sphi 0, %s90
    %s112 = sphi 0, %s114
    %s115 = sphi 0, %s112
    %s116 = sphi 0, %s115
    %s132 = sphi 0, %s116
    %s138 = sphi 0, %s140
    %s141 = sphi 0, %s138
    %s142 = sphi 0, %s141
    %s158 = sphi 0, %s142
    %s164 = sphi 0, %s166
    %s167 = sphi 0, %s164
    %s168 = sphi 0, %s167
    %s184 = sphi 0, %s168
  $region4: #{tpu_custom_call.1} parent=0 // loop_header_branch
    %15 = sbr.rel (%p13) target = $region8
  $region5: #{tpu_custom_call.1} parent=0 // loop_body
    %s17 = ssub.s32 %s12, 1
    %s18 = ssub.s32 %s12, 2
    %s25 = sadd.s32 1, %s20
    %p26 = scmp.ge.s32.totalorder %s25, 1
    %s27 = scalar_select %p26, 0, %s25
    %s28 = sadd.s32 1, %s19
    %s29 = scalar_select %p26, %s28, %s19
    %p30 = scmp.ge.s32.totalorder %s29, 16
    %s31 = scalar_select %p30, 0, %s29
    %s32 = ssub.s32 %s19, %s31
    %p33 = scmp.eq.s32.totalorder %s32, 0
    %s35 = sadd.s32 %s34, 1
    %s36 = scalar_select %p33, %s34, %s35
    %p39 = pneg %p33
    %p40 = scmp.eq.s32.totalorder %s12, 15
    %p41 = por %p39, %p40
    %p42 = scmp.ne.s32.totalorder %s34, %s37
    %p43 = scmp.eq.s32.totalorder %s12, 0
    %p44 = por %p42, %p43
    %p45 = scmp.ne.s32.totalorder %s34, %s37
    %p46 = scmp.eq.s32.totalorder %s17, 15
    %p47 = por %p45, %p46
    %p48 = scmp.ne.s32.totalorder %s37, %s38
    %p49 = scmp.eq.s32.totalorder %s17, 0
    %p50 = por %p48, %p49
    %p51 = scmp.ne.s32.totalorder %s37, %s38
    %p52 = scmp.eq.s32.totalorder %s18, 15
    %p53 = por %p51, %p52
    %p55 = scmp.ne.s32.totalorder %s38, %s54
    %p56 = scmp.eq.s32.totalorder %s18, 0
    %p57 = por %p55, %p56
    %s58 = ssub.s32 %s20, %s27
    %p59 = scmp.eq.s32.totalorder %s58, 0
    %s61 = sadd.s32 %s60, 1
    %s62 = scalar_select %p59, %s60, %s61
    %p65 = pneg %p59
    %p66 = scmp.eq.s32.totalorder %s12, 15
    %p67 = por %p65, %p66
    %p68 = scmp.ne.s32.totalorder %s60, %s63
    %p69 = scmp.eq.s32.totalorder %s12, 0
    %p70 = por %p68, %p69
    %p71 = scmp.ne.s32.totalorder %s60, %s63
    %p72 = scmp.eq.s32.totalorder %s17, 15
    %p73 = por %p71, %p72
    %p74 = scmp.ne.s32.totalorder %s63, %s64
    %p75 = scmp.eq.s32.totalorder %s17, 0
    %p76 = por %p74, %p75
    %p77 = scmp.ne.s32.totalorder %s63, %s64
    %p78 = scmp.eq.s32.totalorder %s18, 15
    %p79 = por %p77, %p78
    %p81 = scmp.ne.s32.totalorder %s64, %s80
    %p82 = scmp.eq.s32.totalorder %s18, 0
    %p83 = por %p81, %p82
    %s84 = ssub.s32 %s19, %s31
    %p85 = scmp.eq.s32.totalorder %s84, 0
    %s87 = sadd.s32 %s86, 1
    %s88 = scalar_select %p85, %s86, %s87
    %p91 = pneg %p85
    %p92 = scmp.eq.s32.totalorder %s12, 15
    %p93 = por %p91, %p92
    %p94 = scmp.ne.s32.totalorder %s86, %s89
    %p95 = scmp.eq.s32.totalorder %s12, 0
    %p96 = por %p94, %p95
    %p97 = scmp.ne.s32.totalorder %s86, %s89
    %p98 = scmp.eq.s32.totalorder %s17, 15
    %p99 = por %p97, %p98
    %p100 = scmp.ne.s32.totalorder %s89, %s90
    %p101 = scmp.eq.s32.totalorder %s17, 0
    %p102 = por %p100, %p101
    %p103 = scmp.ne.s32.totalorder %s89, %s90
    %p104 = scmp.eq.s32.totalorder %s18, 15
    %p105 = por %p103, %p104
    %p107 = scmp.ne.s32.totalorder %s90, %s106
    %p108 = scmp.eq.s32.totalorder %s18, 0
    %p109 = por %p107, %p108
    %s110 = ssub.s32 %s20, %s27
    %p111 = scmp.eq.s32.totalorder %s110, 0
    %s113 = sadd.s32 %s112, 1
    %s114 = scalar_select %p111, %s112, %s113
    %p117 = pneg %p111
    %p118 = scmp.eq.s32.totalorder %s12, 15
    %p119 = por %p117, %p118
    %p120 = scmp.ne.s32.totalorder %s112, %s115
    %p121 = scmp.eq.s32.totalorder %s12, 0
    %p122 = por %p120, %p121
    %p123 = scmp.ne.s32.totalorder %s112, %s115
    %p124 = scmp.eq.s32.totalorder %s17, 15
    %p125 = por %p123, %p124
    %p126 = scmp.ne.s32.totalorder %s115, %s116
    %p127 = scmp.eq.s32.totalorder %s17, 0
    %p128 = por %p126, %p127
    %p129 = scmp.ne.s32.totalorder %s115, %s116
    %p130 = scmp.eq.s32.totalorder %s18, 15
    %p131 = por %p129, %p130
    %p133 = scmp.ne.s32.totalorder %s116, %s132
    %p134 = scmp.eq.s32.totalorder %s18, 0
    %p135 = por %p133, %p134
    %s136 = ssub.s32 %s19, %s31
    %p137 = scmp.eq.s32.totalorder %s136, 0
    %s139 = sadd.s32 %s138, 1
    %s140 = scalar_select %p137, %s138, %s139
    %p143 = pneg %p137
    %p144 = scmp.eq.s32.totalorder %s12, 15
    %p145 = por %p143, %p144
    %p146 = scmp.ne.s32.totalorder %s138, %s141
    %p147 = scmp.eq.s32.totalorder %s12, 0
    %p148 = por %p146, %p147
    %p149 = scmp.ne.s32.totalorder %s138, %s141
    %p150 = scmp.eq.s32.totalorder %s17, 15
    %p151 = por %p149, %p150
    %p152 = scmp.ne.s32.totalorder %s141, %s142
    %p153 = scmp.eq.s32.totalorder %s17, 0
    %p154 = por %p152, %p153
    %p155 = scmp.ne.s32.totalorder %s141, %s142
    %p156 = scmp.eq.s32.totalorder %s18, 15
    %p157 = por %p155, %p156
    %p159 = scmp.ne.s32.totalorder %s142, %s158
    %p160 = scmp.eq.s32.totalorder %s18, 0
    %p161 = por %p159, %p160
    %s162 = ssub.s32 %s19, %s31
    %p163 = scmp.eq.s32.totalorder %s162, 0
    %s165 = sadd.s32 %s164, 1
    %s166 = scalar_select %p163, %s164, %s165
    %p169 = pneg %p163
    %p170 = scmp.eq.s32.totalorder %s12, 15
    %p171 = por %p169, %p170
    %p172 = scmp.ne.s32.totalorder %s164, %s167
    %p173 = scmp.eq.s32.totalorder %s12, 0
    %p174 = por %p172, %p173
    %p175 = scmp.ne.s32.totalorder %s164, %s167
    %p176 = scmp.eq.s32.totalorder %s17, 15
    %p177 = por %p175, %p176
    %p178 = scmp.ne.s32.totalorder %s167, %s168
    %p179 = scmp.eq.s32.totalorder %s17, 0
    %p180 = por %p178, %p179
    %p181 = scmp.ne.s32.totalorder %s167, %s168
    %p182 = scmp.eq.s32.totalorder %s18, 15
    %p183 = por %p181, %p182
    %p185 = scmp.ne.s32.totalorder %s168, %s184
    %p186 = scmp.eq.s32.totalorder %s18, 0
    %p187 = por %p185, %p186
    %p188 = scmp.le.s32.totalorder 1, %s12
    %p189 = scmp.lt.s32.totalorder %s12, 17
    %p190 = pnand %p188, %p189
    %p191 = pneg %p190
    // Predicated region
    $region9: #{tpu_custom_call.1} parent=5 // pred_check
      _
    $region10: #{tpu_custom_call.1} parent=5 // pred_check_branch
      %193 = sbr.rel (%p190) target = $region12
    $region11: #{tpu_custom_call.1} parent=5 // pred_region
      %s194 = ssub.s32 %s12, 1
      // Predicated region
      $region13: #{tpu_custom_call.1} parent=11 // pred_check
        %p195 = pneg %p76
      $region14: #{tpu_custom_call.1} parent=11 // pred_check_branch
        %197 = sbr.rel (%p195) target = $region16
      $region15: #{tpu_custom_call.1} parent=11 // pred_region
        %p198 = scmp.lt.s32.totalorder %s22, 0
        %s199 = scalar_select %p198, %s22, 0
        %s200 = smul.addr %s199, 8
        %s201 = scalar_lea.vmem %s1, %s200
      $region16: #{tpu_custom_call.1} parent=11 // pred_fallthru
        _
      // Predicated region
      $region17: #{tpu_custom_call.1} parent=11 // pred_check
        %p202 = pneg %p128
      $region18: #{tpu_custom_call.1} parent=11 // pred_check_branch
        %204 = sbr.rel (%p202) target = $region20
      $region19: #{tpu_custom_call.1} parent=11 // pred_region
        %p205 = scmp.lt.s32.totalorder %s22, 0
        %s206 = scalar_select %p205, %s22, 0
        %s207 = scalar_lea.vmem %s3, %s206
      $region20: #{tpu_custom_call.1} parent=11 // pred_fallthru
        _
    $region12: #{tpu_custom_call.1} parent=5 // pred_fallthru
      _
    %p208 = scmp.lt.s32.totalorder %s12, 16
    // Predicated region
    $region21: #{tpu_custom_call.1} parent=5 // pred_check
      %p209 = pneg %p208
    $region22: #{tpu_custom_call.1} parent=5 // pred_check_branch
      %211 = sbr.rel (%p209) target = $region24
    $region23: #{tpu_custom_call.1} parent=5 // pred_region
      // Predicated region
      $region25: #{tpu_custom_call.1} parent=23 // pred_check
        %p212 = pneg %p44
      $region26: #{tpu_custom_call.1} parent=23 // pred_check_branch
        %214 = sbr.rel (%p212) target = $region28
      $region27: #{tpu_custom_call.1} parent=23 // pred_region
        %p215 = scmp.lt.s32.totalorder %s19, 15
        %s216 = scalar_select %p215, %s19, 15
        %s217 = smul.addr %s216, 8
        %s218 = scalar_lea.vmem %s0, %s217
      $region28: #{tpu_custom_call.1} parent=23 // pred_fallthru
        _
      // Predicated region
      $region29: #{tpu_custom_call.1} parent=23 // pred_check
        %p219 = pneg %p96
      $region30: #{tpu_custom_call.1} parent=23 // pred_check_branch
        %221 = sbr.rel (%p219) target = $region32
      $region31: #{tpu_custom_call.1} parent=23 // pred_region
        %p222 = scmp.lt.s32.totalorder %s19, 15
        %s223 = scalar_select %p222, %s19, 15
        %s224 = smul.addr %s223, 8
        %s225 = scalar_lea.vmem %s2, %s224
      $region32: #{tpu_custom_call.1} parent=23 // pred_fallthru
        _
    $region24: #{tpu_custom_call.1} parent=5 // pred_fallthru
      _
    %p226 = scmp.le.s32.totalorder 1, %s12
    %p227 = scmp.lt.s32.totalorder %s12, 17
    %p228 = pnand %p226, %p227
    %p229 = pneg %p228
    // Predicated region
    $region33: #{tpu_custom_call.1} parent=5 // pred_check
      _
    $region34: #{tpu_custom_call.1} parent=5 // pred_check_branch
      %231 = sbr.rel (%p228) target = $region36
    $region35: #{tpu_custom_call.1} parent=5 // pred_region
      %s232 = ssub.s32 %s12, 1
      %p233 = scmp.lt.s32.totalorder %s21, 15
      %s234 = scalar_select %p233, %s21, 15
      %s235 = smul.addr %s234, 8
      %s236 = scalar_lea.vmem %s0, %s235
      %p237 = pneg %p50
      %p238 = pneg %p47
      %p239 = scmp.lt.s32.totalorder %s22, 0
      %s240 = scalar_select %p239, %s22, 0
      %s241 = smul.addr %s240, 8
      %s242 = scalar_lea.vmem %s1, %s241
      %p243 = pneg %p76
      %p244 = pneg %p73
      %p245 = scmp.lt.s32.totalorder %s21, 15
      %s246 = scalar_select %p245, %s21, 15
      %s247 = smul.addr %s246, 8
      %s248 = scalar_lea.vmem %s2, %s247
      %p249 = pneg %p102
      %p250 = pneg %p99
      %p251 = scmp.lt.s32.totalorder %s22, 0
      %s252 = scalar_select %p251, %s22, 0
      %s253 = scalar_lea.vmem %s3, %s252
      %p254 = pneg %p128
      %p255 = pneg %p125
      %p256 = pneg %p154
      %p257 = pneg %p151
      %p258 = scmp.lt.s32.totalorder %s21, 15
      %s259 = scalar_select %p258, %s21, 15
      %s260 = smul.addr %s259, 8
      %s261 = scalar_lea.vmem %s4, %s260
      %p262 = pneg %p180
      %p263 = pneg %p177
      %p264 = scmp.lt.s32.totalorder %s21, 15
      %s265 = scalar_select %p264, %s21, 15
      %s266 = smul.addr %s265, 8
      %s267 = scalar_lea.vmem %s5, %s266
      %p268 = scmp.lt.s32.totalorder %s21, 15
      %s269 = scalar_select %p268, %s21, 15
      %s270 = smul.addr %s269, 8
      %s271 = scalar_lea.vmem %s0, %s270
      %p272 = scmp.lt.s32.totalorder %s22, 0
      %s273 = scalar_select %p272, %s22, 0
      %s274 = smul.addr %s273, 8
      %s275 = scalar_lea.vmem %s1, %s274
      %p276 = scmp.lt.s32.totalorder %s21, 15
      %s277 = scalar_select %p276, %s21, 15
      %s278 = smul.addr %s277, 8
      %s279 = scalar_lea.vmem %s2, %s278
      %p280 = scmp.lt.s32.totalorder %s22, 0
      %s281 = scalar_select %p280, %s22, 0
      %s282 = scalar_lea.vmem %s3, %s281
      %p283 = scmp.lt.s32.totalorder %s21, 15
      %s284 = scalar_select %p283, %s21, 15
      %s285 = smul.addr %s284, 8
      %s286 = scalar_lea.vmem %s4, %s285
      %p287 = scmp.lt.s32.totalorder %s21, 15
      %s288 = scalar_select %p287, %s21, 15
      %s289 = smul.addr %s288, 8
      %s290 = scalar_lea.vmem %s5, %s289
      %p291 = scmp.eq.s32.totalorder %s22, 0
      // Predicated region
      $region37: #{tpu_custom_call.1} parent=35 // pred_check
        %p292 = pneg %p291
      $region38: #{tpu_custom_call.1} parent=35 // pred_check_branch
        %294 = sbr.rel (%p292) target = $region40
      $region39: #{tpu_custom_call.1} parent=35 // pred_region
        %295 = vst [vmem:[#allocation2] sm:$0xff] -3e+38
        %296 = vst [vmem:[#allocation3] sm:$0xff] 3e+38
      $region40: #{tpu_custom_call.1} parent=35 // pred_fallthru
        _
      %v297 = vld [vmem:[%s271] sm:$0xff]
      %v298 = vld [vmem:[%s275] sm:$0xff]
      %v299 = vld [vmem:[%s275 + $0x8] sm:$0xff]
      %v300 = vld [vmem:[%s275 + $0x10] sm:$0xff]
      %v301 = vld [vmem:[%s275 + $0x18] sm:$0xff]
      %v302 = vld [vmem:[%s275 + $0x20] sm:$0xff]
      %vm303 = vcmask 326656
      %v305 = vsel %vm303, %v297, 0
      %307 = vmatpush.msra.mxu0 0.0
      %308 = vmatpush.msra.mxu0 0.0
      %309 = vmatpush.msra.mxu0 0.0
      %310 = vmatpush.msra.mxu0 0.0
      %311 = vmatpush.msra.mxu0 0.0
      %312 = vmatpush.msra.mxu0 0.0
      %313 = vmatpush.msra.mxu0 0.0
      %314 = vmatpush.msra.mxu0 0.0
      %315 = vmatpush.msra.mxu0 0.0
      %316 = vmatpush.msra.mxu0 0.0
      %317 = vmatpush.msra.mxu0 0.0
      %318 = vmatpush.msra.mxu0 %v302
      %319 = vmatpush.msra.mxu0 %v301
      %320 = vmatpush.msra.mxu0 %v300
      %321 = vmatpush.msra.mxu0 %v299
      %322 = vmatpush.msra.mxu0 %v298
      %323 = vmatmul.f32.gmra.mxu0 %v305
      %v324 = vpop.f32.mrf.mxu0
      %v325 = vadd.f32 0.0, %v324
      %326 = vdwg.mxu0
      %v327 = vld [vmem:[%s279] sm:$0xff]
      %v328 = vld [vmem:[#allocation2] sm:$0xff]
      %v329 = vld [vmem:[#allocation3] sm:$0xff]
      %v330 = vld [vmem:[%s282] sm:$0x1]
      %331 = vset.pattern.permute.xlu0 0
      %332 = vperm.xlu0 %331, %v327
      %v333 = vpop.permute.xlu0 %332
      %v334 = vperm.slane %v330, 0
      %vm335 = vcmp.eq.s32.totalorder %v333, %v334
      %v336 = vsel %vm335, %v325, -3e+38
      %v337 = vmax.f32 %v328, %v336
      %v338 = vsel %vm335, 3e+38, %v325
      %v339 = vmin.f32 %v329, %v338
      %340 = vst [vmem:[#allocation2] sm:$0xff] %v337
      %341 = vst [vmem:[#allocation3] sm:$0xff] %v339
      // Predicated region
      $region41: #{tpu_custom_call.1} parent=35 // pred_check
        %p342 = pneg %p291
      $region42: #{tpu_custom_call.1} parent=35 // pred_check_branch
        %344 = sbr.rel (%p342) target = $region44
      $region43: #{tpu_custom_call.1} parent=35 // pred_region
        %v345 = vld [vmem:[#allocation2] sm:$0xff]
        %346 = vmax.xlane.f32.xlu0 %v345
        %v347 = vpop.xlane.xlu0 %346
        %v348 = vld [vmem:[#allocation3] sm:$0xff]
        %349 = vmin.xlane.f32.xlu0 %v348
        %v350 = vpop.xlane.xlu0 %349
        %v351 = vmax.f32 %v347, 1e-12
        %v352 = vrsqrt.pop %v351
        %v353 = vmul.f32 %v352, %v351
        %v354 = vmul.f32 %v353, %v352
        %v355 = vmul.f32 0.5, %v354
        %v356 = vsub.f32 1.5, %v355
        %v357 = vmul.f32 %v352, %v356
        %v358 = vmul.f32 %v351, %v357
        %vm359 = vcmp.eq.f32.partialorder %v351, inf
        %v360 = vsel %vm359, %v351, %v358
        %vm361 = vcmp.eq.f32.partialorder %v351, 0.0
        %v362 = vand.u32 %v351, 2147483648
        %v363 = vsel %vm361, %v362, %v360
        %v364 = vmax.f32 %v350, 1e-12
        %v365 = vrsqrt.pop %v364
        %v366 = vmul.f32 %v365, %v364
        %v367 = vmul.f32 %v366, %v365
        %v368 = vmul.f32 0.5, %v367
        %v369 = vsub.f32 1.5, %v368
        %v370 = vmul.f32 %v365, %v369
        %v371 = vmul.f32 %v364, %v370
        %vm372 = vcmp.eq.f32.partialorder %v364, inf
        %v373 = vsel %vm372, %v364, %v371
        %vm374 = vcmp.eq.f32.partialorder %v364, 0.0
        %v375 = vand.u32 %v364, 2147483648
        %v376 = vsel %vm374, %v375, %v373
        %v377 = vsub.f32 %v363, %v376
        %v378 = vadd.f32 %v377, 0.5
        %v379 = vmax.f32 %v378, 0.0
        %vm380 = vcmask 7168
        %381 = vst.msk [vmem:[%s286] sm:$0xff] %vm380, %v379
        %vm382 = vcmp.gt.f32.partialorder %v376, %v363
        %v383 = vsel %vm382, 1, 0
        %v384 = vcvt.s32.f32 %v383
        %385 = vst.msk [vmem:[%s290] sm:$0xff] %vm380, %v384
      $region44: #{tpu_custom_call.1} parent=35 // pred_fallthru
        _
      %p386 = scmp.lt.s32.totalorder %s21, 15
      %s387 = scalar_select %p386, %s21, 15
      %s388 = smul.addr %s387, 8
      %s389 = scalar_lea.vmem %s4, %s388
      %p390 = scmp.lt.s32.totalorder %s21, 15
      %s391 = scalar_select %p390, %s21, 15
      %s392 = smul.addr %s391, 8
      %s393 = scalar_lea.vmem %s5, %s392
      // Predicated region
      $region45: #{tpu_custom_call.1} parent=35 // pred_check
        %p394 = pneg %p151
      $region46: #{tpu_custom_call.1} parent=35 // pred_check_branch
        %396 = sbr.rel (%p394) target = $region48
      $region47: #{tpu_custom_call.1} parent=35 // pred_region
        _
      $region48: #{tpu_custom_call.1} parent=35 // pred_fallthru
        _
      // Predicated region
      $region49: #{tpu_custom_call.1} parent=35 // pred_check
        %p397 = pneg %p177
      $region50: #{tpu_custom_call.1} parent=35 // pred_check_branch
        %399 = sbr.rel (%p397) target = $region52
      $region51: #{tpu_custom_call.1} parent=35 // pred_region
        _
      $region52: #{tpu_custom_call.1} parent=35 // pred_fallthru
        _
    $region36: #{tpu_custom_call.1} parent=5 // pred_fallthru
      _
    %p400 = scmp.le.s32.totalorder 2, %s12
    // Predicated region
    $region53: #{tpu_custom_call.1} parent=5 // pred_check
      %p401 = pneg %p400
    $region54: #{tpu_custom_call.1} parent=5 // pred_check_branch
      %403 = sbr.rel (%p401) target = $region56
    $region55: #{tpu_custom_call.1} parent=5 // pred_region
      %s404 = ssub.s32 %s12, 2
      // Predicated region
      $region57: #{tpu_custom_call.1} parent=55 // pred_check
        %p405 = pneg %p157
      $region58: #{tpu_custom_call.1} parent=55 // pred_check_branch
        %407 = sbr.rel (%p405) target = $region60
      $region59: #{tpu_custom_call.1} parent=55 // pred_region
        %p408 = scmp.lt.s32.totalorder %s23, 15
        %s409 = scalar_select %p408, %s23, 15
        %s410 = smul.addr %s409, 8
        %s411 = scalar_lea.vmem %s4, %s410
      $region60: #{tpu_custom_call.1} parent=55 // pred_fallthru
        _
      // Predicated region
      $region61: #{tpu_custom_call.1} parent=55 // pred_check
        %p412 = pneg %p183
      $region62: #{tpu_custom_call.1} parent=55 // pred_check_branch
        %414 = sbr.rel (%p412) target = $region64
      $region63: #{tpu_custom_call.1} parent=55 // pred_region
        %p415 = scmp.lt.s32.totalorder %s23, 15
        %s416 = scalar_select %p415, %s23, 15
        %s417 = smul.addr %s416, 8
        %s418 = scalar_lea.vmem %s5, %s417
      $region64: #{tpu_custom_call.1} parent=55 // pred_fallthru
        _
    $region56: #{tpu_custom_call.1} parent=5 // pred_fallthru
      _
  $region6: #{tpu_custom_call.1} parent=0 // loop_footer
    %s16 = sadd.s32 1, %s12
  $region7: #{tpu_custom_call.1} parent=0 // loop_footer_branch
    %11 = sbr.rel target = $region3
  $region8: #{tpu_custom_call.1} parent=0 // loop_exit
    _

</llo_original>
